<compile_context>
chip_gen: v5e
topology: v5e:2x2
jax: 0.10.0
libtpu: 0.0.40
codegen_flags: <defaults>
</compile_context>

<pallas_src>
import functools

import jax
import jax.numpy as jnp
from jax.experimental import pallas as pl
from jax.experimental.pallas import tpu as pltpu

_LANES = 128
_NC = 2            # grid "core" axis: maps to the 2 TensorCores on v7x,
                   # degenerates to a serial loop on v5e/v6e (1 TC).
_ALIGN = 32        # packed-row alignment, safe for f32 / bf16 / int8 tiling
_TR_CAP = 4096     # max packed rows per grid step


def _round_up(x, m):
    return ((x + m - 1) // m) * m


def _cdiv(a, b):
    return (a + b - 1) // b


def _next_pow2(x):
    return 1 if x <= 1 else 1 << (x - 1).bit_length()


def _ppo_loss_kernel(p_ref, q_ref, sa_ref, m_ref, loss_ref, ent_ref, *, epsilon):
    step = pl.program_id(1)

    @pl.when(step == 0)
    def _init():
        loss_ref[...] = jnp.zeros_like(loss_ref)
        ent_ref[...] = jnp.zeros_like(ent_ref)

    # Load in native dtype, upcast in-register.
    p = p_ref[...].astype(jnp.float32)      # (TR, 128) packed policy
    q = q_ref[...].astype(jnp.float32)      # (TR, 128) packed old_policy
    sa = sa_ref[...]                        # (TR, 128) advantage at action lane
    m = m_ref[...]                          # (128, 128) group-end summing matrix

    # Segmented lane reductions on the idle MXU: column end(g) of `m` picks up
    # every lane of group g (one batch row), so each dot is a per-row sum.
    s_p = jnp.dot(p * sa, m, preferred_element_type=jnp.float32)   # adv * p[b, a_b]
    s_q = jnp.dot(q * sa, m, preferred_element_type=jnp.float32)   # adv * q[b, a_b]
    s_a = jnp.dot(sa, m, preferred_element_type=jnp.float32)       # adv

    # ratio = p_a / q_a (the advantage factor cancels).  Guarded so lanes that
    # carry no row (s_q == 0) stay finite and contribute exactly 0 via s_a == 0.
    # TODO(synk): a *valid* row with old_policy[action] == 0 yields inf/NaN in
    # PyTorch; here it is guarded to a finite value (degenerate-input divergence).
    denom = jnp.where(s_q != 0.0, s_q, 1.0)
    ratio = s_p / denom
    loss1 = s_a * ratio
    loss2 = s_a * jnp.clip(ratio, 1.0 - epsilon, 1.0 + epsilon)
    contrib = jnp.minimum(loss1, loss2)     # nonzero only at group-end lanes

    # Entropy term: p * log(p), guarded for p == 0 (covers zero padding too).
    plogp = jnp.where(p > 0.0, p * jnp.log(p), 0.0)

    # Fold (TR, 128) tiles into vreg-shaped (8, 128) partial sums (VPU adds
    # only); the single cross-lane/sublane reduction happens in the wrapper.
    loss_ref[0] += contrib.reshape(-1, 8, _LANES).sum(axis=0)
    ent_ref[0] += plogp.reshape(-1, 8, _LANES).sum(axis=0)


def _pack(x2d, a_pad, r_pad):
    """Zero-pad columns to a_pad, flatten, pad to r_pad*128, view as (r_pad,128)."""
    b, a = x2d.shape
    if a_pad != a:
        x2d = jnp.pad(x2d, ((0, 0), (0, a_pad - a)))
    flat = x2d.reshape(b * a_pad)
    extra = r_pad * _LANES - flat.shape[0]
    if extra:
        flat = jnp.pad(flat, (0, extra))
    return flat.reshape(r_pad, _LANES)


@functools.partial(jax.jit, static_argnames=("epsilon",))
def _ppo_loss_core(policy, old_policy, action, advantage, epsilon):
    B, A = policy.shape

    # Packing geometry: groups of L lanes hold one batch row (or a 128-lane
    # slice of one when A > 128; the gather math still works because sel_adv
    # has a single nonzero lane per batch row).
    a_pad = _next_pow2(A) if A <= _LANES else _round_up(A, _LANES)
    L = min(a_pad, _LANES)

    # action + advantage fused into one packed side input:
    #   sel_adv[b, a] = advantage[b] if a == action[b] else 0
    act = action.reshape(B).astype(jnp.int32)
    adv = advantage.reshape(B).astype(jnp.float32)
    col = jnp.arange(A, dtype=jnp.int32)
    sel_adv = jnp.where(act[:, None] == col[None, :], adv[:, None], 0.0)

    # Tile sizing (packed rows per grid step), lane-padding aware:
    #   2 pipeline buffers x (policy + old_policy in native dtype + sel_adv f32).
    itemsize = jnp.dtype(policy.dtype).itemsize
    per_row_bytes = 2 * (2 * itemsize + 4) * _LANES
    budget = 12 * 1024 * 1024        # fits v5e's 16 MiB scoped-VMEM default
    tr = (budget // per_row_bytes) // _ALIGN * _ALIGN
    tr = max(_ALIGN, min(_TR_CAP, tr))

    r_real = _cdiv(B * a_pad, _LANES)            # packed rows of real data
    tr = min(tr, _round_up(r_real, _ALIGN))
    steps = _cdiv(r_real, _NC * tr)
    r_pad = _NC * steps * tr

    p_pk = _pack(policy, a_pad, r_pad)
    q_pk = _pack(old_policy, a_pad, r_pad)
    sa_pk = _pack(sel_adv, a_pad, r_pad)

    # Constant "group-end" matrix: column end(g) sums the lanes of group g.
    lane = jnp.arange(_LANES, dtype=jnp.int32)
    group_end = (lane // L) * L + (L - 1)
    m = (lane[None, :] == group_end[:, None]).astype(jnp.float32)

    kernel = functools.partial(_ppo_loss_kernel, epsilon=float(epsilon))
    tile = lambda c, i: (c * steps + i, 0)

    out_loss, out_ent = pl.pallas_call(
        kernel,
        out_shape=(jax.ShapeDtypeStruct((_NC, 8, _LANES), jnp.float32),
                   jax.ShapeDtypeStruct((_NC, 8, _LANES), jnp.float32)),
        grid_spec=pltpu.PrefetchScalarGridSpec(
            num_scalar_prefetch=0,
            grid=(_NC, steps),
            in_specs=[
                pl.BlockSpec((tr, _LANES), tile),                     # policy (packed)
                pl.BlockSpec((tr, _LANES), tile),                     # old_policy (packed)
                pl.BlockSpec((tr, _LANES), tile),                     # sel_adv (packed)
                pl.BlockSpec((_LANES, _LANES), lambda c, i: (0, 0)),  # group-end matrix
            ],
            out_specs=[
                pl.BlockSpec((1, 8, _LANES), lambda c, i: (c, 0, 0)),  # loss partials
                pl.BlockSpec((1, 8, _LANES), lambda c, i: (c, 0, 0)),  # entropy partials
            ],
        ),
        compiler_params=pltpu.CompilerParams(
            dimension_semantics=("parallel", "arbitrary"),
            vmem_limit_bytes=32 * 1024 * 1024),
    )(p_pk, q_pk, sa_pk, m)

    loss = -jnp.sum(out_loss) / B
    entropy = -jnp.sum(out_ent) / B
    return loss, entropy


def ppo_loss(policy, old_policy, action, advantage, epsilon,
             entropy_beta=None, default_entropy_beta=None):
    """Mirrors PPOLoss.forward: returns (loss, monitors)."""
    loss, entropy = _ppo_loss_core(policy, old_policy, action, advantage,
                                   epsilon=float(epsilon))
    monitors = {}
    if entropy_beta is None:
        entropy_beta = default_entropy_beta
    if entropy_beta is not None:
        monitors["ppo_loss"] = loss
        monitors["entropy_loss"] = -entropy * entropy_beta
        loss = loss - entropy * entropy_beta
    monitors["entropy"] = entropy
    return loss, monitors


if __name__ == "__main__":
    B, A = 8, 16
    key = jax.random.PRNGKey(0)
    k1, k2, k3, k4 = jax.random.split(key, 4)

    # Valid probability distributions so log(policy) is finite.
    policy = jax.nn.softmax(jax.random.normal(k1, (B, A), jnp.float32), axis=-1)
    old_policy = jax.nn.softmax(jax.random.normal(k2, (B, A), jnp.float32), axis=-1)
    action = jax.random.randint(k3, (B,), 0, A, dtype=jnp.int32)
    advantage = jax.random.normal(k4, (B,), jnp.float32)
    epsilon = 0.2
    entropy_beta = 0.01   # PPOLoss(entropy_beta=0.01)

    loss, monitors = ppo_loss(policy, old_policy, action, advantage, epsilon,
                              default_entropy_beta=entropy_beta)
    jax.block_until_ready(loss)
    jax.block_until_ready(monitors["entropy"])

    # Pure-JAX reference check.
    p_a = jnp.take_along_axis(policy, action[:, None], axis=1)[:, 0]
    q_a = jnp.take_along_axis(old_policy, action[:, None], axis=1)[:, 0]
    ratio = p_a / q_a
    ent_ref = jnp.mean(-jnp.sum(policy * jnp.log(policy), axis=1))
    l1 = advantage * ratio
    l2 = advantage * jnp.clip(ratio, 1 - epsilon, 1 + epsilon)
    loss_ref = -jnp.mean(jnp.minimum(l1, l2)) - ent_ref * entropy_beta
    assert jnp.allclose(loss, loss_ref, atol=1e-5), (loss, loss_ref)
    assert jnp.allclose(monitors["entropy"], ent_ref, atol=1e-5)

    print("KERNEL_OK")
</pallas_src>

<mosaic_0001>
module attributes {stable_mosaic.version = 11 : i64} {
  func.func @_ppo_loss_kernel(%arg0: i32, %arg1: i32, %arg2: memref<32x128xf32, #tpu.memory_space<vmem>>, %arg3: memref<32x128xf32, #tpu.memory_space<vmem>>, %arg4: memref<32x128xf32, #tpu.memory_space<vmem>>, %arg5: memref<128x128xf32, #tpu.memory_space<vmem>>, %arg6: memref<1x8x128xf32, #tpu.memory_space<vmem>>, %arg7: memref<1x8x128xf32, #tpu.memory_space<vmem>>) attributes {dimension_semantics = [#tpu.dimension_semantics<parallel>, #tpu.dimension_semantics<arbitrary>], iteration_bounds = array<i64: 2, 1>, scalar_prefetch = 0 : i64, scratch_operands = 0 : i64, tpu.core_type = #tpu.core_type<tc>, window_params = [{transform_indices = @transform_0, window_bounds = array<i64: 32, 128>}, {transform_indices = @transform_1, window_bounds = array<i64: 32, 128>}, {transform_indices = @transform_2, window_bounds = array<i64: 32, 128>}, {pipeline_mode = #tpu.pipeline_mode<synchronous>, transform_indices = @transform_3, window_bounds = array<i64: 128, 128>}, {transform_indices = @transform_4, window_bounds = array<i64: 1, 8, 128>}, {transform_indices = @transform_5, window_bounds = array<i64: 1, 8, 128>}]} {
    %c0_i32 = arith.constant 0 : i32
    %0 = arith.cmpi eq, %arg1, %c0_i32 : i32
    %1 = arith.extui %0 : i1 to i32
    %c0_i32_0 = arith.constant 0 : i32
    %2 = arith.cmpi ne, %1, %c0_i32_0 : i32
    scf.if %2 {
      %cst_30 = arith.constant 0.000000e+00 : f32
      %46 = vector.broadcast %cst_30 : f32 to vector<1x8x128xf32>
      %c0_31 = arith.constant 0 : index
      %c0_32 = arith.constant 0 : index
      %c0_33 = arith.constant 0 : index
      %47 = vector.load %arg6[%c0_31, %c0_32, %c0_33] : memref<1x8x128xf32, #tpu.memory_space<vmem>>, vector<1x8x128xf32>
      tpu.vector_store %arg6[%c0_31, %c0_32, %c0_33], %46 {strides = array<i32>} : memref<1x8x128xf32, #tpu.memory_space<vmem>>, vector<1x8x128xf32>,
      %cst_34 = arith.constant 0.000000e+00 : f32
      %48 = vector.broadcast %cst_34 : f32 to vector<1x8x128xf32>
      %c0_35 = arith.constant 0 : index
      %c0_36 = arith.constant 0 : index
      %c0_37 = arith.constant 0 : index
      %49 = vector.load %arg7[%c0_35, %c0_36, %c0_37] : memref<1x8x128xf32, #tpu.memory_space<vmem>>, vector<1x8x128xf32>
      tpu.vector_store %arg7[%c0_35, %c0_36, %c0_37], %48 {strides = array<i32>} : memref<1x8x128xf32, #tpu.memory_space<vmem>>, vector<1x8x128xf32>,
    } else {
    }
    %c0 = arith.constant 0 : index
    %c0_1 = arith.constant 0 : index
    %3 = vector.load %arg2[%c0, %c0_1] : memref<32x128xf32, #tpu.memory_space<vmem>>, vector<32x128xf32>
    %c0_2 = arith.constant 0 : index
    %c0_3 = arith.constant 0 : index
    %4 = vector.load %arg3[%c0_2, %c0_3] : memref<32x128xf32, #tpu.memory_space<vmem>>, vector<32x128xf32>
    %c0_4 = arith.constant 0 : index
    %c0_5 = arith.constant 0 : index
    %5 = vector.load %arg4[%c0_4, %c0_5] : memref<32x128xf32, #tpu.memory_space<vmem>>, vector<32x128xf32>
    %c0_6 = arith.constant 0 : index
    %c0_7 = arith.constant 0 : index
    %6 = vector.load %arg5[%c0_6, %c0_7] : memref<128x128xf32, #tpu.memory_space<vmem>>, vector<128x128xf32>
    %7 = arith.mulf %3, %5 : vector<32x128xf32>
    %cst = arith.constant dense<0.000000e+00> : vector<32x128xf32>
    %8 = tpu.matmul %7, %6, %cst {dimension_numbers = #tpu.dot_dimension_numbers<[1], [0], [0], [1], [0, 0, 1, 1], [], []>} : vector<32x128xf32>, vector<128x128xf32>, vector<32x128xf32> -> vector<32x128xf32>
    %9 = arith.mulf %4, %5 : vector<32x128xf32>
    %cst_8 = arith.constant dense<0.000000e+00> : vector<32x128xf32>
    %10 = tpu.matmul %9, %6, %cst_8 {dimension_numbers = #tpu.dot_dimension_numbers<[1], [0], [0], [1], [0, 0, 1, 1], [], []>} : vector<32x128xf32>, vector<128x128xf32>, vector<32x128xf32> -> vector<32x128xf32>
    %cst_9 = arith.constant dense<0.000000e+00> : vector<32x128xf32>
    %11 = tpu.matmul %5, %6, %cst_9 {dimension_numbers = #tpu.dot_dimension_numbers<[1], [0], [0], [1], [0, 0, 1, 1], [], []>} : vector<32x128xf32>, vector<128x128xf32>, vector<32x128xf32> -> vector<32x128xf32>
    %cst_10 = arith.constant 0.000000e+00 : f32
    %12 = vector.broadcast %cst_10 : f32 to vector<32x128xf32>
    %13 = arith.cmpf one, %10, %12 : vector<32x128xf32>
    %cst_11 = arith.constant 1.000000e+00 : f32
    %14 = vector.broadcast %cst_11 : f32 to vector<32x128xf32>
    %15 = arith.select %13, %10, %14 : vector<32x128xi1>, vector<32x128xf32>
    %16 = arith.divf %8, %15 : vector<32x128xf32>
    %17 = arith.mulf %11, %16 : vector<32x128xf32>
    %cst_12 = arith.constant 8.000000e-01 : f32
    %cst_13 = arith.constant 1.200000e+00 : f32
    %18 = vector.broadcast %cst_12 : f32 to vector<32x128xf32>
    %19 = arith.maximumf %18, %16 : vector<32x128xf32>
    %20 = vector.broadcast %cst_13 : f32 to vector<32x128xf32>
    %21 = arith.minimumf %20, %19 : vector<32x128xf32>
    %22 = arith.mulf %11, %21 : vector<32x128xf32>
    %23 = arith.minimumf %17, %22 : vector<32x128xf32>
    %cst_14 = arith.constant 0.000000e+00 : f32
    %24 = vector.broadcast %cst_14 : f32 to vector<32x128xf32>
    %25 = arith.cmpf ogt, %3, %24 : vector<32x128xf32>
    %26 = math.log %3 : vector<32x128xf32>
    %27 = arith.mulf %3, %26 : vector<32x128xf32>
    %cst_15 = arith.constant 0.000000e+00 : f32
    %28 = vector.broadcast %cst_15 : f32 to vector<32x128xf32>
    %29 = arith.select %25, %27, %28 : vector<32x128xi1>, vector<32x128xf32>
    %c0_16 = arith.constant 0 : index
    %c0_17 = arith.constant 0 : index
    %c0_18 = arith.constant 0 : index
    %30 = vector.load %arg6[%c0_16, %c0_17, %c0_18] : memref<1x8x128xf32, #tpu.memory_space<vmem>>, vector<1x8x128xf32>
    %31 = vector.shape_cast %30 : vector<1x8x128xf32> to vector<8x128xf32>
    %32 = vector.shape_cast %23 : vector<32x128xf32> to vector<4x8x128xf32>
    %cst_19 = arith.constant dense<0.000000e+00> : vector<8x128xf32>
    %33 = vector.multi_reduction <add>, %32, %cst_19 [0] : vector<4x8x128xf32> to vector<8x128xf32>
    %34 = arith.addf %31, %33 : vector<8x128xf32>
    %c0_20 = arith.constant 0 : index
    %c0_21 = arith.constant 0 : index
    %c0_22 = arith.constant 0 : index
    %35 = vector.load %arg6[%c0_20, %c0_21, %c0_22] : memref<1x8x128xf32, #tpu.memory_space<vmem>>, vector<1x8x128xf32>
    %36 = vector.shape_cast %35 : vector<1x8x128xf32> to vector<8x128xf32>
    %37 = vector.shape_cast %34 : vector<8x128xf32> to vector<1x8x128xf32>
    tpu.vector_store %arg6[%c0_20, %c0_21, %c0_22], %37 {strides = array<i32>} : memref<1x8x128xf32, #tpu.memory_space<vmem>>, vector<1x8x128xf32>,
    %c0_23 = arith.constant 0 : index
    %c0_24 = arith.constant 0 : index
    %c0_25 = arith.constant 0 : index
    %38 = vector.load %arg7[%c0_23, %c0_24, %c0_25] : memref<1x8x128xf32, #tpu.memory_space<vmem>>, vector<1x8x128xf32>
    %39 = vector.shape_cast %38 : vector<1x8x128xf32> to vector<8x128xf32>
    %40 = vector.shape_cast %29 : vector<32x128xf32> to vector<4x8x128xf32>
    %cst_26 = arith.constant dense<0.000000e+00> : vector<8x128xf32>
    %41 = vector.multi_reduction <add>, %40, %cst_26 [0] : vector<4x8x128xf32> to vector<8x128xf32>
    %42 = arith.addf %39, %41 : vector<8x128xf32>
    %c0_27 = arith.constant 0 : index
    %c0_28 = arith.constant 0 : index
    %c0_29 = arith.constant 0 : index
    %43 = vector.load %arg7[%c0_27, %c0_28, %c0_29] : memref<1x8x128xf32, #tpu.memory_space<vmem>>, vector<1x8x128xf32>
    %44 = vector.shape_cast %43 : vector<1x8x128xf32> to vector<8x128xf32>
    %45 = vector.shape_cast %42 : vector<8x128xf32> to vector<1x8x128xf32>
    tpu.vector_store %arg7[%c0_27, %c0_28, %c0_29], %45 {strides = array<i32>} : memref<1x8x128xf32, #tpu.memory_space<vmem>>, vector<1x8x128xf32>,
    return
  }
  func.func @transform_0(%arg0: i32, %arg1: i32) -> (i32, i32) {
    %c1_i32 = arith.constant 1 : i32
    %0 = arith.muli %arg0, %c1_i32 : i32
    %1 = arith.addi %0, %arg1 : i32
    %c0_i32 = arith.constant 0 : i32
    %c0_i32_0 = arith.constant 0 : i32
    return %1, %c0_i32 : i32, i32
  }
  func.func @transform_1(%arg0: i32, %arg1: i32) -> (i32, i32) {
    %c1_i32 = arith.constant 1 : i32
    %0 = arith.muli %arg0, %c1_i32 : i32
    %1 = arith.addi %0, %arg1 : i32
    %c0_i32 = arith.constant 0 : i32
    %c0_i32_0 = arith.constant 0 : i32
    return %1, %c0_i32 : i32, i32
  }
  func.func @transform_2(%arg0: i32, %arg1: i32) -> (i32, i32) {
    %c1_i32 = arith.constant 1 : i32
    %0 = arith.muli %arg0, %c1_i32 : i32
    %1 = arith.addi %0, %arg1 : i32
    %c0_i32 = arith.constant 0 : i32
    %c0_i32_0 = arith.constant 0 : i32
    return %1, %c0_i32 : i32, i32
  }
  func.func @transform_3(%arg0: i32, %arg1: i32) -> (i32, i32) {
    %c0_i32 = arith.constant 0 : i32
    %c0_i32_0 = arith.constant 0 : i32
    %c0_i32_1 = arith.constant 0 : i32
    return %c0_i32, %c0_i32_0 : i32, i32
  }
  func.func @transform_4(%arg0: i32, %arg1: i32) -> (i32, i32, i32) {
    %c0_i32 = arith.constant 0 : i32
    %c0_i32_0 = arith.constant 0 : i32
    %c0_i32_1 = arith.constant 0 : i32
    return %arg0, %c0_i32, %c0_i32_0 : i32, i32, i32
  }
  func.func @transform_5(%arg0: i32, %arg1: i32) -> (i32, i32, i32) {
    %c0_i32 = arith.constant 0 : i32
    %c0_i32_0 = arith.constant 0 : i32
    %c0_i32_1 = arith.constant 0 : i32
    return %arg0, %c0_i32, %c0_i32_0 : i32, i32, i32
  }
}

</mosaic_0001>

<llo_original>
// kernel: _ppo_loss_core.1
$region0: #{_ppo_loss_core.1}
  #allocation0 [shape = 'u32[]', space=smem, size = 0x4, offset = 0x4, fixed_abs, tag = 'smem constant byte address 0x4 - core index']
  #allocation1 [shape = 'u32[72,128]{1,0:T(1,128)}', space=vmem, size = 0x9000, scoped, tag = 'internal scratch']
  %s0 = inlined_call_operand.vmem [shape: f32[64,128], index: 0, kind: input, shape index: {}]
  %s1 = inlined_call_operand.vmem [shape: f32[64,128], index: 1, kind: input, shape index: {}]
  %s2 = inlined_call_operand.vmem [shape: f32[64,128], index: 2, kind: input, shape index: {}]
  %s3 = inlined_call_operand.vmem [shape: f32[128,128], index: 3, kind: input, shape index: {}]
  %s4 = inlined_call_operand.vmem [shape: f32[2,8,128], index: 4, kind: output, shape index: {0}]
  %s5 = inlined_call_operand.vmem [shape: f32[2,8,128], index: 5, kind: output, shape index: {1}]
  %6 = xla_tuple %s4, %s5
  %s7 = sld [smem:[#allocation0]]
  $region61: #{_ppo_loss_core.1} parent=0
    _
  %s9 = ssub.s32 1, %s7
  %s10 = scalar_select 0, %s9, %s7
  loop: start=0, step=1, limit=4
  $region2: #{_ppo_loss_core.1} parent=0 // loop_pre_header
    _
  $region3: #{_ppo_loss_core.1} parent=0 // loop_header
    %s12 = sphi 0, %s16
    %p13 = scmp.ge.s32.totalorder %s12, 4
    %s19 = sphi 0, %s31
    %s20 = sphi 0, %s27
    %s21 = sphi 0, %s19
    %s22 = sphi 0, %s20
    %s23 = sphi 0, %s21
    %s24 = sphi 0, %s22
    %s36 = sphi 0, %s38
    %s39 = sphi 0, %s36
    %s40 = sphi 0, %s39
    %s56 = sphi 0, %s40
    %s64 = sphi 0, %s66
    %s67 = sphi 0, %s64
    %s68 = sphi 0, %s67
    %s84 = sphi 0, %s68
    %s92 = sphi 0, %s94
    %s95 = sphi 0, %s92
    %s96 = sphi 0, %s95
    %s112 = sphi 0, %s96
    %s116 = sphi 0, %s116
    %s118 = sphi 0, %s116
    %s119 = sphi 0, %s118
    %s133 = sphi 0, %s119
    %s139 = sphi 0, %s141
    %s142 = sphi 0, %s139
    %s143 = sphi 0, %s142
    %s159 = sphi 0, %s143
    %s165 = sphi 0, %s167
    %s168 = sphi 0, %s165
    %s169 = sphi 0, %s168
    %s185 = sphi 0, %s169
  $region4: #{_ppo_loss_core.1} parent=0 // loop_header_branch
    %15 = sbr.rel (%p13) target = $region8
  $region5: #{_ppo_loss_core.1} parent=0 // loop_body
    %s17 = ssub.s32 %s12, 1
    %s18 = ssub.s32 %s12, 2
    %s25 = sadd.s32 1, %s20
    %p26 = scmp.ge.s32.totalorder %s25, 1
    %s27 = scalar_select %p26, 0, %s25
    %s28 = sadd.s32 1, %s19
    %s29 = scalar_select %p26, %s28, %s19
    %p30 = scmp.ge.s32.totalorder %s29, 2
    %s31 = scalar_select %p30, 0, %s29
    %s32 = sadd.s32 %s19, %s20
    %s33 = sadd.s32 %s31, %s27
    %s34 = ssub.s32 %s32, %s33
    %p35 = scmp.eq.s32.totalorder %s34, 0
    %s37 = sadd.s32 %s36, 1
    %s38 = scalar_select %p35, %s36, %s37
    %p41 = pneg %p35
    %p42 = scmp.eq.s32.totalorder %s12, 1
    %p43 = por %p41, %p42
    %p44 = scmp.ne.s32.totalorder %s36, %s39
    %p45 = scmp.eq.s32.totalorder %s12, 0
    %p46 = por %p44, %p45
    %p47 = scmp.ne.s32.totalorder %s36, %s39
    %p48 = scmp.eq.s32.totalorder %s17, 1
    %p49 = por %p47, %p48
    %p50 = scmp.ne.s32.totalorder %s39, %s40
    %p51 = scmp.eq.s32.totalorder %s17, 0
    %p52 = por %p50, %p51
    %p53 = scmp.ne.s32.totalorder %s39, %s40
    %p54 = scmp.eq.s32.totalorder %s18, 1
    %p55 = por %p53, %p54
    %p57 = scmp.ne.s32.totalorder %s40, %s56
    %p58 = scmp.eq.s32.totalorder %s18, 0
    %p59 = por %p57, %p58
    %s60 = sadd.s32 %s19, %s20
    %s61 = sadd.s32 %s31, %s27
    %s62 = ssub.s32 %s60, %s61
    %p63 = scmp.eq.s32.totalorder %s62, 0
    %s65 = sadd.s32 %s64, 1
    %s66 = scalar_select %p63, %s64, %s65
    %p69 = pneg %p63
    %p70 = scmp.eq.s32.totalorder %s12, 1
    %p71 = por %p69, %p70
    %p72 = scmp.ne.s32.totalorder %s64, %s67
    %p73 = scmp.eq.s32.totalorder %s12, 0
    %p74 = por %p72, %p73
    %p75 = scmp.ne.s32.totalorder %s64, %s67
    %p76 = scmp.eq.s32.totalorder %s17, 1
    %p77 = por %p75, %p76
    %p78 = scmp.ne.s32.totalorder %s67, %s68
    %p79 = scmp.eq.s32.totalorder %s17, 0
    %p80 = por %p78, %p79
    %p81 = scmp.ne.s32.totalorder %s67, %s68
    %p82 = scmp.eq.s32.totalorder %s18, 1
    %p83 = por %p81, %p82
    %p85 = scmp.ne.s32.totalorder %s68, %s84
    %p86 = scmp.eq.s32.totalorder %s18, 0
    %p87 = por %p85, %p86
    %s88 = sadd.s32 %s19, %s20
    %s89 = sadd.s32 %s31, %s27
    %s90 = ssub.s32 %s88, %s89
    %p91 = scmp.eq.s32.totalorder %s90, 0
    %s93 = sadd.s32 %s92, 1
    %s94 = scalar_select %p91, %s92, %s93
    %p97 = pneg %p91
    %p98 = scmp.eq.s32.totalorder %s12, 1
    %p99 = por %p97, %p98
    %p100 = scmp.ne.s32.totalorder %s92, %s95
    %p101 = scmp.eq.s32.totalorder %s12, 0
    %p102 = por %p100, %p101
    %p103 = scmp.ne.s32.totalorder %s92, %s95
    %p104 = scmp.eq.s32.totalorder %s17, 1
    %p105 = por %p103, %p104
    %p106 = scmp.ne.s32.totalorder %s95, %s96
    %p107 = scmp.eq.s32.totalorder %s17, 0
    %p108 = por %p106, %p107
    %p109 = scmp.ne.s32.totalorder %s95, %s96
    %p110 = scmp.eq.s32.totalorder %s18, 1
    %p111 = por %p109, %p110
    %p113 = scmp.ne.s32.totalorder %s96, %s112
    %p114 = scmp.eq.s32.totalorder %s18, 0
    %p115 = por %p113, %p114
    %s117 = sadd.s32 %s116, 1
    %p120 = scmp.eq.s32.totalorder %s12, 1
    %p121 = scmp.ne.s32.totalorder %s116, %s118
    %p122 = scmp.eq.s32.totalorder %s12, 0
    %p123 = por %p121, %p122
    %p124 = scmp.ne.s32.totalorder %s116, %s118
    %p125 = scmp.eq.s32.totalorder %s17, 1
    %p126 = por %p124, %p125
    %p127 = scmp.ne.s32.totalorder %s118, %s119
    %p128 = scmp.eq.s32.totalorder %s17, 0
    %p129 = por %p127, %p128
    %p130 = scmp.ne.s32.totalorder %s118, %s119
    %p131 = scmp.eq.s32.totalorder %s18, 1
    %p132 = por %p130, %p131
    %p134 = scmp.ne.s32.totalorder %s119, %s133
    %p135 = scmp.eq.s32.totalorder %s18, 0
    %p136 = por %p134, %p135
    %s137 = ssub.s32 %s19, %s31
    %p138 = scmp.eq.s32.totalorder %s137, 0
    %s140 = sadd.s32 %s139, 1
    %s141 = scalar_select %p138, %s139, %s140
    %p144 = pneg %p138
    %p145 = scmp.eq.s32.totalorder %s12, 1
    %p146 = por %p144, %p145
    %p147 = scmp.ne.s32.totalorder %s139, %s142
    %p148 = scmp.eq.s32.totalorder %s12, 0
    %p149 = por %p147, %p148
    %p150 = scmp.ne.s32.totalorder %s139, %s142
    %p151 = scmp.eq.s32.totalorder %s17, 1
    %p152 = por %p150, %p151
    %p153 = scmp.ne.s32.totalorder %s142, %s143
    %p154 = scmp.eq.s32.totalorder %s17, 0
    %p155 = por %p153, %p154
    %p156 = scmp.ne.s32.totalorder %s142, %s143
    %p157 = scmp.eq.s32.totalorder %s18, 1
    %p158 = por %p156, %p157
    %p160 = scmp.ne.s32.totalorder %s143, %s159
    %p161 = scmp.eq.s32.totalorder %s18, 0
    %p162 = por %p160, %p161
    %s163 = ssub.s32 %s19, %s31
    %p164 = scmp.eq.s32.totalorder %s163, 0
    %s166 = sadd.s32 %s165, 1
    %s167 = scalar_select %p164, %s165, %s166
    %p170 = pneg %p164
    %p171 = scmp.eq.s32.totalorder %s12, 1
    %p172 = por %p170, %p171
    %p173 = scmp.ne.s32.totalorder %s165, %s168
    %p174 = scmp.eq.s32.totalorder %s12, 0
    %p175 = por %p173, %p174
    %p176 = scmp.ne.s32.totalorder %s165, %s168
    %p177 = scmp.eq.s32.totalorder %s17, 1
    %p178 = por %p176, %p177
    %p179 = scmp.ne.s32.totalorder %s168, %s169
    %p180 = scmp.eq.s32.totalorder %s17, 0
    %p181 = por %p179, %p180
    %p182 = scmp.ne.s32.totalorder %s168, %s169
    %p183 = scmp.eq.s32.totalorder %s18, 1
    %p184 = por %p182, %p183
    %p186 = scmp.ne.s32.totalorder %s169, %s185
    %p187 = scmp.eq.s32.totalorder %s18, 0
    %p188 = por %p186, %p187
    %p189 = scmp.le.s32.totalorder 1, %s12
    %p190 = scmp.lt.s32.totalorder %s12, 3
    %p191 = pnand %p189, %p190
    %p192 = pneg %p191
    // Predicated region
    $region9: #{_ppo_loss_core.1} parent=5 // pred_check
      _
    $region10: #{_ppo_loss_core.1} parent=5 // pred_check_branch
      %194 = sbr.rel (%p191) target = $region12
    $region11: #{_ppo_loss_core.1} parent=5 // pred_region
      %s195 = ssub.s32 %s12, 1
      // Predicated region
      $region13: #{_ppo_loss_core.1} parent=11 // pred_check
        %p196 = pneg %p129
      $region14: #{_ppo_loss_core.1} parent=11 // pred_check_branch
        %198 = sbr.rel (%p196) target = $region16
      $region15: #{_ppo_loss_core.1} parent=11 // pred_region
        _
      $region16: #{_ppo_loss_core.1} parent=11 // pred_fallthru
        _
    $region12: #{_ppo_loss_core.1} parent=5 // pred_fallthru
      _
    %p199 = scmp.lt.s32.totalorder %s12, 2
    // Predicated region
    $region17: #{_ppo_loss_core.1} parent=5 // pred_check
      %p200 = pneg %p199
    $region18: #{_ppo_loss_core.1} parent=5 // pred_check_branch
      %202 = sbr.rel (%p200) target = $region20
    $region19: #{_ppo_loss_core.1} parent=5 // pred_region
      // Predicated region
      $region21: #{_ppo_loss_core.1} parent=19 // pred_check
        %p203 = pneg %p46
      $region22: #{_ppo_loss_core.1} parent=19 // pred_check_branch
        %205 = sbr.rel (%p203) target = $region24
      $region23: #{_ppo_loss_core.1} parent=19 // pred_region
        %s206 = sadd.s32 %s19, %s20
        %s207 = smul.u32 4, %s206
        %p208 = scmp.lt.s32.totalorder %s207, 7
        %s209 = scalar_select %p208, %s207, 7
        %s210 = smul.addr %s209, 8
        %s211 = scalar_lea.vmem %s0, %s210
        %s212 = sadd.s32 %s19, %s20
        %s213 = smul.u32 4, %s212
      $region24: #{_ppo_loss_core.1} parent=19 // pred_fallthru
        _
      // Predicated region
      $region25: #{_ppo_loss_core.1} parent=19 // pred_check
        %p214 = pneg %p74
      $region26: #{_ppo_loss_core.1} parent=19 // pred_check_branch
        %216 = sbr.rel (%p214) target = $region28
      $region27: #{_ppo_loss_core.1} parent=19 // pred_region
        %s217 = sadd.s32 %s19, %s20
        %s218 = smul.u32 4, %s217
        %p219 = scmp.lt.s32.totalorder %s218, 7
        %s220 = scalar_select %p219, %s218, 7
        %s221 = smul.addr %s220, 8
        %s222 = scalar_lea.vmem %s1, %s221
        %s223 = sadd.s32 %s19, %s20
        %s224 = smul.u32 4, %s223
      $region28: #{_ppo_loss_core.1} parent=19 // pred_fallthru
        _
      // Predicated region
      $region29: #{_ppo_loss_core.1} parent=19 // pred_check
        %p225 = pneg %p102
      $region30: #{_ppo_loss_core.1} parent=19 // pred_check_branch
        %227 = sbr.rel (%p225) target = $region32
      $region31: #{_ppo_loss_core.1} parent=19 // pred_region
        %s228 = sadd.s32 %s19, %s20
        %s229 = smul.u32 4, %s228
        %p230 = scmp.lt.s32.totalorder %s229, 7
        %s231 = scalar_select %p230, %s229, 7
        %s232 = smul.addr %s231, 8
        %s233 = scalar_lea.vmem %s2, %s232
        %s234 = sadd.s32 %s19, %s20
        %s235 = smul.u32 4, %s234
      $region32: #{_ppo_loss_core.1} parent=19 // pred_fallthru
        _
    $region20: #{_ppo_loss_core.1} parent=5 // pred_fallthru
      _
    %p236 = scmp.le.s32.totalorder 1, %s12
    %p237 = scmp.lt.s32.totalorder %s12, 3
    %p238 = pnand %p236, %p237
    %p239 = pneg %p238
    // Predicated region
    $region33: #{_ppo_loss_core.1} parent=5 // pred_check
      _
    $region34: #{_ppo_loss_core.1} parent=5 // pred_check_branch
      %241 = sbr.rel (%p238) target = $region36
    $region35: #{_ppo_loss_core.1} parent=5 // pred_region
      %s242 = ssub.s32 %s12, 1
      %s243 = sadd.s32 %s21, %s22
      %s244 = smul.u32 4, %s243
      %p245 = scmp.lt.s32.totalorder %s244, 7
      %s246 = scalar_select %p245, %s244, 7
      %s247 = smul.addr %s246, 8
      %s248 = scalar_lea.vmem %s0, %s247
      %p249 = pneg %p52
      %p250 = pneg %p49
      %s251 = sadd.s32 %s21, %s22
      %s252 = smul.u32 4, %s251
      %p253 = scmp.lt.s32.totalorder %s252, 7
      %s254 = scalar_select %p253, %s252, 7
      %s255 = smul.addr %s254, 8
      %s256 = scalar_lea.vmem %s1, %s255
      %p257 = pneg %p80
      %p258 = pneg %p77
      %s259 = sadd.s32 %s21, %s22
      %s260 = smul.u32 4, %s259
      %p261 = scmp.lt.s32.totalorder %s260, 7
      %s262 = scalar_select %p261, %s260, 7
      %s263 = smul.addr %s262, 8
      %s264 = scalar_lea.vmem %s2, %s263
      %p265 = pneg %p108
      %p266 = pneg %p105
      %p267 = pneg %p129
      %p268 = pneg %p126
      %p269 = pneg %p155
      %p270 = pneg %p152
      %p271 = scmp.lt.s32.totalorder %s21, 1
      %s272 = scalar_select %p271, %s21, 1
      %s273 = smul.addr %s272, 8
      %s274 = scalar_lea.vmem %s4, %s273
      %p275 = pneg %p181
      %p276 = pneg %p178
      %p277 = scmp.lt.s32.totalorder %s21, 1
      %s278 = scalar_select %p277, %s21, 1
      %s279 = smul.addr %s278, 8
      %s280 = scalar_lea.vmem %s5, %s279
      %s281 = sadd.s32 %s21, %s22
      %s282 = smul.u32 4, %s281
      %p283 = scmp.lt.s32.totalorder %s282, 7
      %s284 = scalar_select %p283, %s282, 7
      %s285 = smul.addr %s284, 8
      %s286 = scalar_lea.vmem %s0, %s285
      %s287 = sadd.s32 %s21, %s22
      %s288 = smul.u32 4, %s287
      %s289 = sadd.s32 %s21, %s22
      %s290 = smul.u32 4, %s289
      %p291 = scmp.lt.s32.totalorder %s290, 7
      %s292 = scalar_select %p291, %s290, 7
      %s293 = smul.addr %s292, 8
      %s294 = scalar_lea.vmem %s1, %s293
      %s295 = sadd.s32 %s21, %s22
      %s296 = smul.u32 4, %s295
      %s297 = sadd.s32 %s21, %s22
      %s298 = smul.u32 4, %s297
      %p299 = scmp.lt.s32.totalorder %s298, 7
      %s300 = scalar_select %p299, %s298, 7
      %s301 = smul.addr %s300, 8
      %s302 = scalar_lea.vmem %s2, %s301
      %s303 = sadd.s32 %s21, %s22
      %s304 = smul.u32 4, %s303
      %p305 = scmp.lt.s32.totalorder %s21, 1
      %s306 = scalar_select %p305, %s21, 1
      %s307 = smul.addr %s306, 8
      %s308 = scalar_lea.vmem %s4, %s307
      %p309 = scmp.lt.s32.totalorder %s21, 1
      %s310 = scalar_select %p309, %s21, 1
      %s311 = smul.addr %s310, 8
      %s312 = scalar_lea.vmem %s5, %s311
      %p313 = scmp.eq.s32.totalorder %s22, 0
      // Predicated region
      $region37: #{_ppo_loss_core.1} parent=35 // pred_check
        %p314 = pneg %p313
      $region38: #{_ppo_loss_core.1} parent=35 // pred_check_branch
        %316 = sbr.rel (%p314) target = $region40
      $region39: #{_ppo_loss_core.1} parent=35 // pred_region
        %317 = vst [vmem:[%s308] sm:$0xff] 0.0
        %318 = vst [vmem:[%s312] sm:$0xff] 0.0
      $region40: #{_ppo_loss_core.1} parent=35 // pred_fallthru
        _
      %v319 = vld [vmem:[%s286] sm:$0xff]
      %v320 = vld [vmem:[%s286 + $0x8] sm:$0xff]
      %v321 = vld [vmem:[%s286 + $0x10] sm:$0xff]
      %v322 = vld [vmem:[%s286 + $0x18] sm:$0xff]
      %v323 = vld [vmem:[%s294] sm:$0xff]
      %v324 = vld [vmem:[%s294 + $0x8] sm:$0xff]
      %v325 = vld [vmem:[%s294 + $0x10] sm:$0xff]
      %v326 = vld [vmem:[%s294 + $0x18] sm:$0xff]
      %v327 = vld [vmem:[%s302] sm:$0xff]
      %v328 = vld [vmem:[%s302 + $0x8] sm:$0xff]
      %v329 = vld [vmem:[%s302 + $0x10] sm:$0xff]
      %v330 = vld [vmem:[%s302 + $0x18] sm:$0xff]
      %v331 = vld [vmem:[%s3] sm:$0xff]
      %v332 = vld [vmem:[%s3 + $0x8] sm:$0xff]
      %v333 = vld [vmem:[%s3 + $0x10] sm:$0xff]
      %v334 = vld [vmem:[%s3 + $0x18] sm:$0xff]
      %v335 = vld [vmem:[%s3 + $0x20] sm:$0xff]
      %v336 = vld [vmem:[%s3 + $0x28] sm:$0xff]
      %v337 = vld [vmem:[%s3 + $0x30] sm:$0xff]
      %v338 = vld [vmem:[%s3 + $0x38] sm:$0xff]
      %v339 = vld [vmem:[%s3 + $0x40] sm:$0xff]
      %v340 = vld [vmem:[%s3 + $0x48] sm:$0xff]
      %v341 = vld [vmem:[%s3 + $0x50] sm:$0xff]
      %v342 = vld [vmem:[%s3 + $0x58] sm:$0xff]
      %v343 = vld [vmem:[%s3 + $0x60] sm:$0xff]
      %v344 = vld [vmem:[%s3 + $0x68] sm:$0xff]
      %v345 = vld [vmem:[%s3 + $0x70] sm:$0xff]
      %v346 = vld [vmem:[%s3 + $0x78] sm:$0xff]
      %v347 = vmul.f32 %v319, %v327
      %v348 = vmul.f32 %v320, %v328
      %v349 = vmul.f32 %v321, %v329
      %v350 = vmul.f32 %v322, %v330
      %351 = vmatpush.msra.mxu0 %v346
      %352 = vmatpush.msra.mxu0 %v345
      %353 = vmatpush.msra.mxu0 %v344
      %354 = vmatpush.msra.mxu0 %v343
      %355 = vmatpush.msra.mxu0 %v342
      %356 = vmatpush.msra.mxu0 %v341
      %357 = vmatpush.msra.mxu0 %v340
      %358 = vmatpush.msra.mxu0 %v339
      %359 = vmatpush.msra.mxu0 %v338
      %360 = vmatpush.msra.mxu0 %v337
      %361 = vmatpush.msra.mxu0 %v336
      %362 = vmatpush.msra.mxu0 %v335
      %363 = vmatpush.msra.mxu0 %v334
      %364 = vmatpush.msra.mxu0 %v333
      %365 = vmatpush.msra.mxu0 %v332
      %366 = vmatpush.msra.mxu0 %v331
      %367 = vmatmul.f32.gmra.mxu0 %v347
      %v368 = vpop.f32.mrf.mxu0
      %v369 = vadd.f32 0.0, %v368
      %370 = vmatmul.f32.gmra.mxu0 %v348
      %v371 = vpop.f32.mrf.mxu0
      %v372 = vadd.f32 0.0, %v371
      %373 = vmatmul.f32.gmra.mxu0 %v349
      %v374 = vpop.f32.mrf.mxu0
      %v375 = vadd.f32 0.0, %v374
      %376 = vmatmul.f32.gmra.mxu0 %v350
      %v377 = vpop.f32.mrf.mxu0
      %v378 = vadd.f32 0.0, %v377
      %379 = vdwg.mxu0
      %v380 = vmul.f32 %v323, %v327
      %v381 = vmul.f32 %v324, %v328
      %v382 = vmul.f32 %v325, %v329
      %v383 = vmul.f32 %v326, %v330
      %384 = vmatpush.msra.mxu0 %v346
      %385 = vmatpush.msra.mxu0 %v345
      %386 = vmatpush.msra.mxu0 %v344
      %387 = vmatpush.msra.mxu0 %v343
      %388 = vmatpush.msra.mxu0 %v342
      %389 = vmatpush.msra.mxu0 %v341
      %390 = vmatpush.msra.mxu0 %v340
      %391 = vmatpush.msra.mxu0 %v339
      %392 = vmatpush.msra.mxu0 %v338
      %393 = vmatpush.msra.mxu0 %v337
      %394 = vmatpush.msra.mxu0 %v336
      %395 = vmatpush.msra.mxu0 %v335
      %396 = vmatpush.msra.mxu0 %v334
      %397 = vmatpush.msra.mxu0 %v333
      %398 = vmatpush.msra.mxu0 %v332
      %399 = vmatpush.msra.mxu0 %v331
      %400 = vmatmul.f32.gmra.mxu0 %v380
      %v401 = vpop.f32.mrf.mxu0
      %v402 = vadd.f32 0.0, %v401
      %403 = vmatmul.f32.gmra.mxu0 %v381
      %v404 = vpop.f32.mrf.mxu0
      %v405 = vadd.f32 0.0, %v404
      %406 = vmatmul.f32.gmra.mxu0 %v382
      %v407 = vpop.f32.mrf.mxu0
      %v408 = vadd.f32 0.0, %v407
      %409 = vmatmul.f32.gmra.mxu0 %v383
      %v410 = vpop.f32.mrf.mxu0
      %v411 = vadd.f32 0.0, %v410
      %412 = vdwg.mxu0
      %413 = vmatpush.msra.mxu0 %v346
      %414 = vmatpush.msra.mxu0 %v345
      %415 = vmatpush.msra.mxu0 %v344
      %416 = vmatpush.msra.mxu0 %v343
      %417 = vmatpush.msra.mxu0 %v342
      %418 = vmatpush.msra.mxu0 %v341
      %419 = vmatpush.msra.mxu0 %v340
      %420 = vmatpush.msra.mxu0 %v339
      %421 = vmatpush.msra.mxu0 %v338
      %422 = vmatpush.msra.mxu0 %v337
      %423 = vmatpush.msra.mxu0 %v336
      %424 = vmatpush.msra.mxu0 %v335
      %425 = vmatpush.msra.mxu0 %v334
      %426 = vmatpush.msra.mxu0 %v333
      %427 = vmatpush.msra.mxu0 %v332
      %428 = vmatpush.msra.mxu0 %v331
      %429 = vmatmul.f32.gmra.mxu0 %v327
      %v430 = vpop.f32.mrf.mxu0
      %v431 = vadd.f32 0.0, %v430
      %432 = vmatmul.f32.gmra.mxu0 %v328
      %v433 = vpop.f32.mrf.mxu0
      %v434 = vadd.f32 0.0, %v433
      %435 = vmatmul.f32.gmra.mxu0 %v329
      %v436 = vpop.f32.mrf.mxu0
      %v437 = vadd.f32 0.0, %v436
      %438 = vmatmul.f32.gmra.mxu0 %v330
      %v439 = vpop.f32.mrf.mxu0
      %v440 = vadd.f32 0.0, %v439
      %441 = vdwg.mxu0
      %vm442 = vcmp.ne.f32.partialorder %v402, 0.0
      %vm443 = vcmp.ne.f32.partialorder %v405, 0.0
      %vm444 = vcmp.ne.f32.partialorder %v408, 0.0
      %vm445 = vcmp.ne.f32.partialorder %v411, 0.0
      %v446 = vsel %vm442, %v402, 1.0
      %v447 = vsel %vm443, %v405, 1.0
      %v448 = vsel %vm444, %v408, 1.0
      %v449 = vsel %vm445, %v411, 1.0
      %v450 = vrcp.pop %v446
      %v451 = vmul.f32 %v446, %v450
      %v452 = vsub.f32 1.0, %v451
      %v453 = vmul.f32 %v450, %v452
      %v454 = vadd.f32 %v450, %v453
      %vm455 = vweird.f32 %v446
      %vm456 = vweird.f32 %v450
      %vm457 = vmor %vm455, %vm456
      %v458 = vsel %vm457, %v450, %v454
      %v459 = vand.u32 2147483647, %v446
      %vm460 = vcmp.eq.f32.partialorder %v459, 8.507059e+37
      %v461 = vand.u32 %v446, 2147483648
      %v462 = vor.u32 1.1754944e-38, %v461
      %v463 = vsel %vm460, %v462, %v458
      %v464 = vmul.f32 %v369, %v463
      %v465 = vrcp.pop %v447
      %v466 = vmul.f32 %v447, %v465
      %v467 = vsub.f32 1.0, %v466
      %v468 = vmul.f32 %v465, %v467
      %v469 = vadd.f32 %v465, %v468
      %vm470 = vweird.f32 %v447
      %vm471 = vweird.f32 %v465
      %vm472 = vmor %vm470, %vm471
      %v473 = vsel %vm472, %v465, %v469
      %v474 = vand.u32 2147483647, %v447
      %vm475 = vcmp.eq.f32.partialorder %v474, 8.507059e+37
      %v476 = vand.u32 %v447, 2147483648
      %v477 = vor.u32 1.1754944e-38, %v476
      %v478 = vsel %vm475, %v477, %v473
      %v479 = vmul.f32 %v372, %v478
      %v480 = vrcp.pop %v448
      %v481 = vmul.f32 %v448, %v480
      %v482 = vsub.f32 1.0, %v481
      %v483 = vmul.f32 %v480, %v482
      %v484 = vadd.f32 %v480, %v483
      %vm485 = vweird.f32 %v448
      %vm486 = vweird.f32 %v480
      %vm487 = vmor %vm485, %vm486
      %v488 = vsel %vm487, %v480, %v484
      %v489 = vand.u32 2147483647, %v448
      %vm490 = vcmp.eq.f32.partialorder %v489, 8.507059e+37
      %v491 = vand.u32 %v448, 2147483648
      %v492 = vor.u32 1.1754944e-38, %v491
      %v493 = vsel %vm490, %v492, %v488
      %v494 = vmul.f32 %v375, %v493
      %v495 = vrcp.pop %v449
      %v496 = vmul.f32 %v449, %v495
      %v497 = vsub.f32 1.0, %v496
      %v498 = vmul.f32 %v495, %v497
      %v499 = vadd.f32 %v495, %v498
      %vm500 = vweird.f32 %v449
      %vm501 = vweird.f32 %v495
      %vm502 = vmor %vm500, %vm501
      %v503 = vsel %vm502, %v495, %v499
      %v504 = vand.u32 2147483647, %v449
      %vm505 = vcmp.eq.f32.partialorder %v504, 8.507059e+37
      %v506 = vand.u32 %v449, 2147483648
      %v507 = vor.u32 1.1754944e-38, %v506
      %v508 = vsel %vm505, %v507, %v503
      %v509 = vmul.f32 %v378, %v508
      %v510 = vmul.f32 %v431, %v464
      %v511 = vmul.f32 %v434, %v479
      %v512 = vmul.f32 %v437, %v494
      %v513 = vmul.f32 %v440, %v509
      %v514 = vmax.f32 %v464, 0.8
      %v515 = vmax.f32 %v479, 0.8
      %v516 = vmax.f32 %v494, 0.8
      %v517 = vmax.f32 %v509, 0.8
      %v518 = vmin.f32 %v514, 1.2
      %v519 = vmin.f32 %v515, 1.2
      %v520 = vmin.f32 %v516, 1.2
      %v521 = vmin.f32 %v517, 1.2
      %v522 = vmul.f32 %v431, %v518
      %v523 = vmul.f32 %v434, %v519
      %v524 = vmul.f32 %v437, %v520
      %v525 = vmul.f32 %v440, %v521
      %v526 = vmin.f32 %v510, %v522
      %v527 = vmin.f32 %v511, %v523
      %v528 = vmin.f32 %v512, %v524
      %v529 = vmin.f32 %v513, %v525
      %vm530 = vcmp.gt.f32.partialorder %v319, 0.0
      %vm531 = vcmp.gt.f32.partialorder %v320, 0.0
      %vm532 = vcmp.gt.f32.partialorder %v321, 0.0
      %vm533 = vcmp.gt.f32.partialorder %v322, 0.0
      %v534 = vlog2.pop %v319
      %v535 = vmul.f32 %v534, 0.6931472
      %v536 = vlog2.pop %v320
      %v537 = vmul.f32 %v536, 0.6931472
      %v538 = vlog2.pop %v321
      %v539 = vmul.f32 %v538, 0.6931472
      %v540 = vlog2.pop %v322
      %v541 = vmul.f32 %v540, 0.6931472
      %v542 = vmul.f32 %v319, %v535
      %v543 = vmul.f32 %v320, %v537
      %v544 = vmul.f32 %v321, %v539
      %v545 = vmul.f32 %v322, %v541
      %v546 = vsel %vm530, %v542, 0.0
      %v547 = vsel %vm531, %v543, 0.0
      %v548 = vsel %vm532, %v544, 0.0
      %v549 = vsel %vm533, %v545, 0.0
      %v550 = vld [vmem:[%s308] sm:$0xff]
      %v551 = vadd.f32 %v526, %v527
      %v552 = vadd.f32 %v551, %v528
      %v553 = vadd.f32 %v552, %v529
      %v554 = vadd.f32 %v550, %v553
      %555 = vst [vmem:[%s308] sm:$0xff] %v554
      %v556 = vld [vmem:[%s312] sm:$0xff]
      %v557 = vadd.f32 %v546, %v547
      %v558 = vadd.f32 %v557, %v548
      %v559 = vadd.f32 %v558, %v549
      %v560 = vadd.f32 %v556, %v559
      %561 = vst [vmem:[%s312] sm:$0xff] %v560
      %p562 = scmp.lt.s32.totalorder %s21, 1
      %s563 = scalar_select %p562, %s21, 1
      %s564 = smul.addr %s563, 8
      %s565 = scalar_lea.vmem %s4, %s564
      %p566 = scmp.lt.s32.totalorder %s21, 1
      %s567 = scalar_select %p566, %s21, 1
      %s568 = smul.addr %s567, 8
      %s569 = scalar_lea.vmem %s5, %s568
      // Predicated region
      $region41: #{_ppo_loss_core.1} parent=35 // pred_check
        %p570 = pneg %p152
      $region42: #{_ppo_loss_core.1} parent=35 // pred_check_branch
        %572 = sbr.rel (%p570) target = $region44
      $region43: #{_ppo_loss_core.1} parent=35 // pred_region
        _
      $region44: #{_ppo_loss_core.1} parent=35 // pred_fallthru
        _
      // Predicated region
      $region45: #{_ppo_loss_core.1} parent=35 // pred_check
        %p573 = pneg %p178
      $region46: #{_ppo_loss_core.1} parent=35 // pred_check_branch
        %575 = sbr.rel (%p573) target = $region48
      $region47: #{_ppo_loss_core.1} parent=35 // pred_region
        _
      $region48: #{_ppo_loss_core.1} parent=35 // pred_fallthru
        _
    $region36: #{_ppo_loss_core.1} parent=5 // pred_fallthru
      _
    %p576 = scmp.le.s32.totalorder 2, %s12
    // Predicated region
    $region49: #{_ppo_loss_core.1} parent=5 // pred_check
      %p577 = pneg %p576
    $region50: #{_ppo_loss_core.1} parent=5 // pred_check_branch
      %579 = sbr.rel (%p577) target = $region52
    $region51: #{_ppo_loss_core.1} parent=5 // pred_region
      %s580 = ssub.s32 %s12, 2
      // Predicated region
      $region53: #{_ppo_loss_core.1} parent=51 // pred_check
        %p581 = pneg %p158
      $region54: #{_ppo_loss_core.1} parent=51 // pred_check_branch
        %583 = sbr.rel (%p581) target = $region56
      $region55: #{_ppo_loss_core.1} parent=51 // pred_region
        %p584 = scmp.lt.s32.totalorder %s23, 1
        %s585 = scalar_select %p584, %s23, 1
        %s586 = smul.addr %s585, 8
        %s587 = scalar_lea.vmem %s4, %s586
      $region56: #{_ppo_loss_core.1} parent=51 // pred_fallthru
        _
      // Predicated region
      $region57: #{_ppo_loss_core.1} parent=51 // pred_check
        %p588 = pneg %p184
      $region58: #{_ppo_loss_core.1} parent=51 // pred_check_branch
        %590 = sbr.rel (%p588) target = $region60
      $region59: #{_ppo_loss_core.1} parent=51 // pred_region
        %p591 = scmp.lt.s32.totalorder %s23, 1
        %s592 = scalar_select %p591, %s23, 1
        %s593 = smul.addr %s592, 8
        %s594 = scalar_lea.vmem %s5, %s593
      $region60: #{_ppo_loss_core.1} parent=51 // pred_fallthru
        _
    $region52: #{_ppo_loss_core.1} parent=5 // pred_fallthru
      _
  $region6: #{_ppo_loss_core.1} parent=0 // loop_footer
    %s16 = sadd.s32 1, %s12
  $region7: #{_ppo_loss_core.1} parent=0 // loop_footer_branch
    %11 = sbr.rel target = $region3
  $region8: #{_ppo_loss_core.1} parent=0 // loop_exit
    _

</llo_original>
